<compile_context>
chip_gen: v6e
topology: v6e:2x2x1
jax: 0.10.0
libtpu: 0.0.40
codegen_flags: <defaults>
</compile_context>

<pallas_src>
import functools
import math

import jax
import jax.numpy as jnp
from jax.experimental import pallas as pl
from jax.experimental.pallas import tpu as pltpu


_LANE = 128      # lane quantum (last dim)
_SUBLANE = 8     # sublane quantum (second-to-last dim)
_K_TILE = 512    # contraction tile over num_ent when the vocabulary is large


def _round_up(x, m):
    return ((x + m - 1) // m) * m


def _ent_k_tiling(num_ent):
    """Returns (tK, K_pad). Single full-K block for small vocabularies;
    512-wide K tiles (zero-padded) otherwise so resident VMEM stays bounded."""
    if num_ent <= 2 * _K_TILE:
        return num_ent, num_ent
    return _K_TILE, _round_up(num_ent, _K_TILE)


def _vmem_limit_bytes(tB, tK, nK, num_rel, e_pad):
    """Footprint-derived scoped-VMEM request (bytes) with ~2x headroom."""
    two_e = 2 * e_pad
    w_ht = tK * two_e * 2 * (1 if nK == 1 else 2)          # bf16 (dbl-buf if streamed)
    consts = num_rel * two_e * 2 + 2 * two_e * 4           # w_rri bf16 + 2 f32 biases
    acts = 2 * (2 * tB * tK * 2 + tB * num_rel * 2)        # heads+tails+rels, dbl-buf
    outs = 2 * tB * 4
    accs = 2 * tB * two_e * 4                              # f32 scratch accumulators
    temps = 4 * tB * two_e * 4                             # ent_h/ent_t/rel/prod temps
    total = w_ht + consts + acts + outs + accs + temps
    return int(min(64 * 2**20, max(32 * 2**20, 2 * total + (2 << 20))))


def _simple_kernel(heads_ref, rels_ref, tails_ref,
                   w_ht_ref, b_ht_ref,       # [w_h | w_t]  (bf16), bias [1, 2*E_pad] f32
                   w_rri_ref, b_rri_ref,     # [w_r | w_ri] (bf16), bias [1, 2*E_pad] f32
                   out_ref, acc_h_ref, acc_t_ref, *, e_pad):
    k = pl.program_id(1)

    @pl.when(k == 0)
    def _init():
        acc_h_ref[...] = jnp.zeros_like(acc_h_ref)
        acc_t_ref[...] = jnp.zeros_like(acc_t_ref)

    # Two dots against the same entity-weight tile (replaces the old concat copy).
    w_ht = w_ht_ref[...]
    acc_h_ref[...] += jnp.dot(heads_ref[...], w_ht,
                              preferred_element_type=jnp.float32)
    acc_t_ref[...] += jnp.dot(tails_ref[...], w_ht,
                              preferred_element_type=jnp.float32)

    @pl.when(k == pl.num_programs(1) - 1)
    def _finalize():
        b_ht = b_ht_ref[...]
        ent_h = acc_h_ref[...] + b_ht                      # [tB, 2*E_pad] f32
        ent_t = acc_t_ref[...] + b_ht
        rel = jnp.dot(rels_ref[...], w_rri_ref[...],
                      preferred_element_type=jnp.float32) + b_rri_ref[...]

        # Static, tile-aligned splits (e_pad is a multiple of 128 lanes).
        hh = ent_h[:, :e_pad]      # ent_h_embs(heads)
        th = ent_h[:, e_pad:]      # ent_t_embs(heads)
        ht = ent_t[:, :e_pad]      # ent_h_embs(tails)
        tt = ent_t[:, e_pad:]      # ent_t_embs(tails)
        r = rel[:, :e_pad]         # rel_embs(rels)
        ri = rel[:, e_pad:]        # rel_inv_embs(rels)

        # Fused score terms -> single cross-lane (XLU) reduce.
        prod = hh * r * tt + ht * ri * th
        scores = jnp.sum(prod, axis=1, keepdims=True) * 0.5
        out_ref[...] = jnp.clip(scores, -20.0, 20.0)


def pack_params(p, emb_dim):
    """Fuse weight pairs, pad emb dim to a lane multiple, pad num_ent rows for
    K-tiling, cast weights to bf16 (MXU operands); biases stay f32."""
    num_ent = p["w_h"].shape[0]
    e_pad = _round_up(emb_dim, _LANE)
    _, k_pad = _ent_k_tiling(num_ent)

    def pad_cols(a):
        return jnp.pad(a, ((0, 0), (0, e_pad - emb_dim)))

    def pad_rows(a, rows):
        return jnp.pad(a, ((0, rows - a.shape[0]), (0, 0)))

    w_ht = jnp.concatenate([pad_cols(p["w_h"]), pad_cols(p["w_t"])], axis=1)
    w_rri = jnp.concatenate([pad_cols(p["w_r"]), pad_cols(p["w_ri"])], axis=1)
    return {
        "e_pad": e_pad,
        "num_ent": num_ent,
        "num_ent_pad": k_pad,
        "w_ht": pad_rows(w_ht, k_pad).astype(jnp.bfloat16),
        "b_ht": jnp.concatenate([pad_cols(p["b_h"]), pad_cols(p["b_t"])],
                                axis=1).astype(jnp.float32),
        "w_rri": w_rri.astype(jnp.bfloat16),
        "b_rri": jnp.concatenate([pad_cols(p["b_r"]), pad_cols(p["b_ri"])],
                                 axis=1).astype(jnp.float32),
    }


def simple_model_forward(heads, rels, tails, packed):
    """heads/tails: [B, num_ent], rels: [B, num_rel] -> scores [B] f32."""
    B, num_ent = heads.shape
    num_rel = rels.shape[1]
    e_pad = packed["e_pad"]
    assert packed["num_ent"] == num_ent

    tK, k_pad = _ent_k_tiling(num_ent)
    assert packed["w_ht"].shape[0] == k_pad
    nK = k_pad // tK

    # Batch tile: multiple of 8 sublanes, <=512 rows. Give the "parallel" batch
    # axis at least two steps when possible so both v7x TensorCores get work
    # (extra step cost ~0.35us is negligible on single-TC v5e/v6e).
    tB = _round_up(B, _SUBLANE)
    if B >= 2 * _SUBLANE:
        tB = _round_up(-(-B // 2), _SUBLANE)
    tB = min(tB, 512)
    B_pad = _round_up(B, tB)
    nB = B_pad // tB

    # Stream activations in bf16 (halves HBM traffic and activation VMEM tiles).
    heads = heads.astype(jnp.bfloat16)
    tails = tails.astype(jnp.bfloat16)
    rels = rels.astype(jnp.bfloat16)
    if B_pad != B or k_pad != num_ent:
        heads = jnp.pad(heads, ((0, B_pad - B), (0, k_pad - num_ent)))
        tails = jnp.pad(tails, ((0, B_pad - B), (0, k_pad - num_ent)))
    if B_pad != B:
        rels = jnp.pad(rels, ((0, B_pad - B), (0, 0)))

    # Grid-invariant params: whole-array VMEM residents -> fetched once,
    # single-buffered (no wasted double-buffer copy of the largest weight).
    vmem_resident = pl.BlockSpec(memory_space=pltpu.MemorySpace.VMEM)
    if nK == 1:
        w_ht_spec = vmem_resident                                # fully resident
    else:
        w_ht_spec = pl.BlockSpec((tK, 2 * e_pad), lambda i, k: (k, 0))  # streamed on K

    kernel = functools.partial(_simple_kernel, e_pad=e_pad)
    out = pl.pallas_call(
        kernel,
        out_shape=jax.ShapeDtypeStruct((B_pad, 1), jnp.float32),
        grid=(nB, nK),
        in_specs=[
            pl.BlockSpec((tB, tK), lambda i, k: (i, k)),         # heads tile
            pl.BlockSpec((tB, num_rel), lambda i, k: (i, 0)),    # rels tile (per i)
            pl.BlockSpec((tB, tK), lambda i, k: (i, k)),         # tails tile
            w_ht_spec,                                           # [w_h | w_t]
            vmem_resident,                                       # b_ht
            vmem_resident,                                       # w_rri
            vmem_resident,                                       # b_rri
        ],
        out_specs=pl.BlockSpec((tB, 1), lambda i, k: (i, 0)),
        scratch_shapes=[
            pltpu.VMEM((tB, 2 * e_pad), jnp.float32),            # acc: heads @ [w_h|w_t]
            pltpu.VMEM((tB, 2 * e_pad), jnp.float32),            # acc: tails @ [w_h|w_t]
        ],
        compiler_params=pltpu.CompilerParams(
            dimension_semantics=("parallel", "arbitrary"),
            vmem_limit_bytes=_vmem_limit_bytes(tB, tK, nK, num_rel, e_pad),
        ),
    )(heads, rels, tails,
      packed["w_ht"], packed["b_ht"], packed["w_rri"], packed["b_rri"])

    return out[:B, 0]


def init_params(key, num_ent, num_rel, emb_dim):
    """Matches the PyTorch module: weight ~ U(-6/sqrt(d), 6/sqrt(d)),
    bias ~ nn.Linear default U(-1/sqrt(fan_in), 1/sqrt(fan_in)).
    Weights stored transposed ([in_features, emb_dim]); biases [1, emb_dim]."""
    sqrt_size = 6.0 / math.sqrt(emb_dim)
    ks = jax.random.split(key, 8)

    def uni(k, shape, lim):
        return jax.random.uniform(k, shape, jnp.float32, -lim, lim)

    return {
        "w_h": uni(ks[0], (num_ent, emb_dim), sqrt_size),
        "b_h": uni(ks[1], (1, emb_dim), 1.0 / math.sqrt(num_ent)),
        "w_t": uni(ks[2], (num_ent, emb_dim), sqrt_size),
        "b_t": uni(ks[3], (1, emb_dim), 1.0 / math.sqrt(num_ent)),
        "w_r": uni(ks[4], (num_rel, emb_dim), sqrt_size),
        "b_r": uni(ks[5], (1, emb_dim), 1.0 / math.sqrt(num_rel)),
        "w_ri": uni(ks[6], (num_rel, emb_dim), sqrt_size),
        "b_ri": uni(ks[7], (1, emb_dim), 1.0 / math.sqrt(num_rel)),
    }


def reference_forward(heads, rels, tails, p):
    """Pure-JAX reference with the same bf16-operand / f32-accumulate matmuls."""
    def lin(x, w, b):
        return jnp.dot(x.astype(jnp.bfloat16), w.astype(jnp.bfloat16),
                       preferred_element_type=jnp.float32) + b

    hh = lin(heads, p["w_h"], p["b_h"])
    ht = lin(tails, p["w_h"], p["b_h"])
    th = lin(heads, p["w_t"], p["b_t"])
    tt = lin(tails, p["w_t"], p["b_t"])
    r = lin(rels, p["w_r"], p["b_r"])
    ri = lin(rels, p["w_ri"], p["b_ri"])
    s1 = jnp.sum(hh * r * tt, axis=1)
    s2 = jnp.sum(ht * ri * th, axis=1)
    return jnp.clip((s1 + s2) / 2.0, -20.0, 20.0)


if __name__ == "__main__":
    # --- Test 1: tiny shapes -> single-K-block path, grid (1, 1), resident w_ht.
    num_ent, num_rel, emb_dim, B = 32, 16, 32, 8
    kp, kh, kr, kt = jax.random.split(jax.random.PRNGKey(0), 4)
    params = init_params(kp, num_ent, num_rel, emb_dim)
    heads = jax.random.normal(kh, (B, num_ent), jnp.float32)
    rels = jax.random.normal(kr, (B, num_rel), jnp.float32)
    tails = jax.random.normal(kt, (B, num_ent), jnp.float32)
    packed = pack_params(params, emb_dim)
    out = simple_model_forward(heads, rels, tails, packed)
    jax.block_until_ready(out)
    ref = reference_forward(heads, rels, tails, params)
    assert out.shape == (B,)
    assert jnp.allclose(out, ref, atol=1e-3, rtol=1e-3), (out, ref)

    # --- Test 2: larger entity vocab -> exercises the K-tiled "arbitrary" axis
    #             (accumulator scratch) and the 2-step "parallel" batch axis.
    num_ent, num_rel, emb_dim, B = 1300, 24, 48, 20
    kp, kh, kr, kt = jax.random.split(jax.random.PRNGKey(1), 4)
    params = init_params(kp, num_ent, num_rel, emb_dim)
    heads = 0.02 * jax.random.normal(kh, (B, num_ent), jnp.float32)
    rels = 0.1 * jax.random.normal(kr, (B, num_rel), jnp.float32)
    tails = 0.02 * jax.random.normal(kt, (B, num_ent), jnp.float32)
    packed = pack_params(params, emb_dim)
    out = simple_model_forward(heads, rels, tails, packed)
    jax.block_until_ready(out)
    ref = reference_forward(heads, rels, tails, params)
    assert out.shape == (B,)
    assert jnp.allclose(out, ref, atol=5e-3, rtol=5e-3), (out, ref)

    print("KERNEL_OK")
</pallas_src>

<mosaic_0001>
module attributes {stable_mosaic.version = 11 : i64} {
  func.func @_simple_kernel(%arg0: i32, %arg1: i32, %arg2: memref<8x32xbf16, #tpu.memory_space<vmem>>, %arg3: memref<8x16xbf16, #tpu.memory_space<vmem>>, %arg4: memref<8x32xbf16, #tpu.memory_space<vmem>>, %arg5: memref<32x256xbf16, #tpu.memory_space<vmem>>, %arg6: memref<1x256xf32, #tpu.memory_space<vmem>>, %arg7: memref<16x256xbf16, #tpu.memory_space<vmem>>, %arg8: memref<1x256xf32, #tpu.memory_space<vmem>>, %arg9: memref<8x1xf32, #tpu.memory_space<vmem>>, %arg10: memref<8x256xf32, #tpu.memory_space<vmem>>, %arg11: memref<8x256xf32, #tpu.memory_space<vmem>>) attributes {dimension_semantics = [#tpu.dimension_semantics<parallel>, #tpu.dimension_semantics<arbitrary>], iteration_bounds = array<i64: 1, 1>, scalar_prefetch = 0 : i64, scratch_operands = 2 : i64, tpu.core_type = #tpu.core_type<tc>, window_params = [{transform_indices = @transform_0, window_bounds = array<i64: 8, 32>}, {transform_indices = @transform_1, window_bounds = array<i64: 8, 16>}, {transform_indices = @transform_2, window_bounds = array<i64: 8, 32>}, {pipeline_mode = #tpu.pipeline_mode<synchronous>, transform_indices = @transform_3, window_bounds = array<i64: 32, 256>}, {pipeline_mode = #tpu.pipeline_mode<synchronous>, transform_indices = @transform_4, window_bounds = array<i64: 1, 256>}, {pipeline_mode = #tpu.pipeline_mode<synchronous>, transform_indices = @transform_5, window_bounds = array<i64: 16, 256>}, {pipeline_mode = #tpu.pipeline_mode<synchronous>, transform_indices = @transform_6, window_bounds = array<i64: 1, 256>}, {transform_indices = @transform_7, window_bounds = array<i64: 8, 1>}]} {
    %c0_i32 = arith.constant 0 : i32
    %0 = arith.cmpi eq, %arg1, %c0_i32 : i32
    %1 = arith.extui %0 : i1 to i32
    %c0_i32_0 = arith.constant 0 : i32
    %2 = arith.cmpi ne, %1, %c0_i32_0 : i32
    scf.if %2 {
      %cst_17 = arith.constant 0.000000e+00 : f32
      %17 = vector.broadcast %cst_17 : f32 to vector<8x256xf32>
      %c0_18 = arith.constant 0 : index
      %c0_19 = arith.constant 0 : index
      %18 = vector.load %arg10[%c0_18, %c0_19] : memref<8x256xf32, #tpu.memory_space<vmem>>, vector<8x256xf32>
      tpu.vector_store %arg10[%c0_18, %c0_19], %17 {strides = array<i32>} : memref<8x256xf32, #tpu.memory_space<vmem>>, vector<8x256xf32>,
      %cst_20 = arith.constant 0.000000e+00 : f32
      %19 = vector.broadcast %cst_20 : f32 to vector<8x256xf32>
      %c0_21 = arith.constant 0 : index
      %c0_22 = arith.constant 0 : index
      %20 = vector.load %arg11[%c0_21, %c0_22] : memref<8x256xf32, #tpu.memory_space<vmem>>, vector<8x256xf32>
      tpu.vector_store %arg11[%c0_21, %c0_22], %19 {strides = array<i32>} : memref<8x256xf32, #tpu.memory_space<vmem>>, vector<8x256xf32>,
    } else {
    }
    %c0 = arith.constant 0 : index
    %c0_1 = arith.constant 0 : index
    %3 = vector.load %arg5[%c0, %c0_1] : memref<32x256xbf16, #tpu.memory_space<vmem>>, vector<32x256xbf16>
    %c0_2 = arith.constant 0 : index
    %c0_3 = arith.constant 0 : index
    %4 = vector.load %arg10[%c0_2, %c0_3] : memref<8x256xf32, #tpu.memory_space<vmem>>, vector<8x256xf32>
    %c0_4 = arith.constant 0 : index
    %c0_5 = arith.constant 0 : index
    %5 = vector.load %arg2[%c0_4, %c0_5] : memref<8x32xbf16, #tpu.memory_space<vmem>>, vector<8x32xbf16>
    %cst = arith.constant dense<0.000000e+00> : vector<8x256xf32>
    %6 = tpu.matmul %5, %3, %cst {dimension_numbers = #tpu.dot_dimension_numbers<[1], [0], [0], [1], [0, 0, 1, 1], [], []>} : vector<8x32xbf16>, vector<32x256xbf16>, vector<8x256xf32> -> vector<8x256xf32>
    %7 = arith.addf %4, %6 : vector<8x256xf32>
    %c0_6 = arith.constant 0 : index
    %c0_7 = arith.constant 0 : index
    %8 = vector.load %arg10[%c0_6, %c0_7] : memref<8x256xf32, #tpu.memory_space<vmem>>, vector<8x256xf32>
    tpu.vector_store %arg10[%c0_6, %c0_7], %7 {strides = array<i32>} : memref<8x256xf32, #tpu.memory_space<vmem>>, vector<8x256xf32>,
    %c0_8 = arith.constant 0 : index
    %c0_9 = arith.constant 0 : index
    %9 = vector.load %arg11[%c0_8, %c0_9] : memref<8x256xf32, #tpu.memory_space<vmem>>, vector<8x256xf32>
    %c0_10 = arith.constant 0 : index
    %c0_11 = arith.constant 0 : index
    %10 = vector.load %arg4[%c0_10, %c0_11] : memref<8x32xbf16, #tpu.memory_space<vmem>>, vector<8x32xbf16>
    %cst_12 = arith.constant dense<0.000000e+00> : vector<8x256xf32>
    %11 = tpu.matmul %10, %3, %cst_12 {dimension_numbers = #tpu.dot_dimension_numbers<[1], [0], [0], [1], [0, 0, 1, 1], [], []>} : vector<8x32xbf16>, vector<32x256xbf16>, vector<8x256xf32> -> vector<8x256xf32>
    %12 = arith.addf %9, %11 : vector<8x256xf32>
    %c0_13 = arith.constant 0 : index
    %c0_14 = arith.constant 0 : index
    %13 = vector.load %arg11[%c0_13, %c0_14] : memref<8x256xf32, #tpu.memory_space<vmem>>, vector<8x256xf32>
    tpu.vector_store %arg11[%c0_13, %c0_14], %12 {strides = array<i32>} : memref<8x256xf32, #tpu.memory_space<vmem>>, vector<8x256xf32>,
    %c0_i32_15 = arith.constant 0 : i32
    %14 = arith.cmpi eq, %arg1, %c0_i32_15 : i32
    %15 = arith.extui %14 : i1 to i32
    %c0_i32_16 = arith.constant 0 : i32
    %16 = arith.cmpi ne, %15, %c0_i32_16 : i32
    scf.if %16 {
      %c0_17 = arith.constant 0 : index
      %c0_18 = arith.constant 0 : index
      %17 = vector.load %arg6[%c0_17, %c0_18] : memref<1x256xf32, #tpu.memory_space<vmem>>, vector<1x256xf32>
      %c0_19 = arith.constant 0 : index
      %c0_20 = arith.constant 0 : index
      %18 = vector.load %arg10[%c0_19, %c0_20] : memref<8x256xf32, #tpu.memory_space<vmem>>, vector<8x256xf32>
      %19 = vector.broadcast %17 : vector<1x256xf32> to vector<8x256xf32>
      %20 = arith.addf %18, %19 : vector<8x256xf32>
      %c0_21 = arith.constant 0 : index
      %c0_22 = arith.constant 0 : index
      %21 = vector.load %arg11[%c0_21, %c0_22] : memref<8x256xf32, #tpu.memory_space<vmem>>, vector<8x256xf32>
      %22 = vector.broadcast %17 : vector<1x256xf32> to vector<8x256xf32>
      %23 = arith.addf %21, %22 : vector<8x256xf32>
      %c0_23 = arith.constant 0 : index
      %c0_24 = arith.constant 0 : index
      %24 = vector.load %arg3[%c0_23, %c0_24] : memref<8x16xbf16, #tpu.memory_space<vmem>>, vector<8x16xbf16>
      %c0_25 = arith.constant 0 : index
      %c0_26 = arith.constant 0 : index
      %25 = vector.load %arg7[%c0_25, %c0_26] : memref<16x256xbf16, #tpu.memory_space<vmem>>, vector<16x256xbf16>
      %cst_27 = arith.constant dense<0.000000e+00> : vector<8x256xf32>
      %26 = tpu.matmul %24, %25, %cst_27 {dimension_numbers = #tpu.dot_dimension_numbers<[1], [0], [0], [1], [0, 0, 1, 1], [], []>} : vector<8x16xbf16>, vector<16x256xbf16>, vector<8x256xf32> -> vector<8x256xf32>
      %c0_28 = arith.constant 0 : index
      %c0_29 = arith.constant 0 : index
      %27 = vector.load %arg8[%c0_28, %c0_29] : memref<1x256xf32, #tpu.memory_space<vmem>>, vector<1x256xf32>
      %28 = vector.broadcast %27 : vector<1x256xf32> to vector<8x256xf32>
      %29 = arith.addf %26, %28 : vector<8x256xf32>
      %30 = vector.extract_strided_slice %20 {offsets = [0, 0], sizes = [8, 128], strides = [1, 1]} : vector<8x256xf32> to vector<8x128xf32>
      %31 = vector.extract_strided_slice %20 {offsets = [0, 128], sizes = [8, 128], strides = [1, 1]} : vector<8x256xf32> to vector<8x128xf32>
      %32 = vector.extract_strided_slice %23 {offsets = [0, 0], sizes = [8, 128], strides = [1, 1]} : vector<8x256xf32> to vector<8x128xf32>
      %33 = vector.extract_strided_slice %23 {offsets = [0, 128], sizes = [8, 128], strides = [1, 1]} : vector<8x256xf32> to vector<8x128xf32>
      %34 = vector.extract_strided_slice %29 {offsets = [0, 0], sizes = [8, 128], strides = [1, 1]} : vector<8x256xf32> to vector<8x128xf32>
      %35 = vector.extract_strided_slice %29 {offsets = [0, 128], sizes = [8, 128], strides = [1, 1]} : vector<8x256xf32> to vector<8x128xf32>
      %36 = arith.mulf %30, %34 : vector<8x128xf32>
      %37 = arith.mulf %36, %33 : vector<8x128xf32>
      %38 = arith.mulf %32, %35 : vector<8x128xf32>
      %39 = arith.mulf %38, %31 : vector<8x128xf32>
      %40 = arith.addf %37, %39 : vector<8x128xf32>
      %cst_30 = arith.constant dense<0.000000e+00> : vector<8xf32>
      %41 = vector.multi_reduction <add>, %40, %cst_30 [1] : vector<8x128xf32> to vector<8xf32>
      %42 = vector.shape_cast %41 : vector<8xf32> to vector<8x1xf32>
      %cst_31 = arith.constant 5.000000e-01 : f32
      %43 = vector.broadcast %cst_31 : f32 to vector<8x1xf32>
      %44 = arith.mulf %42, %43 : vector<8x1xf32>
      %cst_32 = arith.constant -2.000000e+01 : f32
      %cst_33 = arith.constant 2.000000e+01 : f32
      %45 = vector.broadcast %cst_32 : f32 to vector<8x1xf32>
      %46 = arith.maximumf %45, %44 : vector<8x1xf32>
      %47 = vector.broadcast %cst_33 : f32 to vector<8x1xf32>
      %48 = arith.minimumf %47, %46 : vector<8x1xf32>
      %c0_34 = arith.constant 0 : index
      %c0_35 = arith.constant 0 : index
      %49 = vector.load %arg9[%c0_34, %c0_35] : memref<8x1xf32, #tpu.memory_space<vmem>>, vector<8x1xf32>
      tpu.vector_store %arg9[%c0_34, %c0_35], %48 {strides = array<i32>} : memref<8x1xf32, #tpu.memory_space<vmem>>, vector<8x1xf32>,
    } else {
    }
    return
  }
  func.func @transform_0(%arg0: i32, %arg1: i32) -> (i32, i32) {
    %c0_i32 = arith.constant 0 : i32
    return %arg0, %arg1 : i32, i32
  }
  func.func @transform_1(%arg0: i32, %arg1: i32) -> (i32, i32) {
    %c0_i32 = arith.constant 0 : i32
    %c0_i32_0 = arith.constant 0 : i32
    return %arg0, %c0_i32 : i32, i32
  }
  func.func @transform_2(%arg0: i32, %arg1: i32) -> (i32, i32) {
    %c0_i32 = arith.constant 0 : i32
    return %arg0, %arg1 : i32, i32
  }
  func.func @transform_3(%arg0: i32, %arg1: i32) -> (i32, i32) {
    %c0_i32 = arith.constant 0 : i32
    %c0_i32_0 = arith.constant 0 : i32
    %c0_i32_1 = arith.constant 0 : i32
    return %c0_i32, %c0_i32_0 : i32, i32
  }
  func.func @transform_4(%arg0: i32, %arg1: i32) -> (i32, i32) {
    %c0_i32 = arith.constant 0 : i32
    %c0_i32_0 = arith.constant 0 : i32
    %c0_i32_1 = arith.constant 0 : i32
    return %c0_i32, %c0_i32_0 : i32, i32
  }
  func.func @transform_5(%arg0: i32, %arg1: i32) -> (i32, i32) {
    %c0_i32 = arith.constant 0 : i32
    %c0_i32_0 = arith.constant 0 : i32
    %c0_i32_1 = arith.constant 0 : i32
    return %c0_i32, %c0_i32_0 : i32, i32
  }
  func.func @transform_6(%arg0: i32, %arg1: i32) -> (i32, i32) {
    %c0_i32 = arith.constant 0 : i32
    %c0_i32_0 = arith.constant 0 : i32
    %c0_i32_1 = arith.constant 0 : i32
    return %c0_i32, %c0_i32_0 : i32, i32
  }
  func.func @transform_7(%arg0: i32, %arg1: i32) -> (i32, i32) {
    %c0_i32 = arith.constant 0 : i32
    %c0_i32_0 = arith.constant 0 : i32
    return %arg0, %c0_i32 : i32, i32
  }
}

</mosaic_0001>

<llo_original>
// kernel: tpu_custom_call.1
$region0: #{tpu_custom_call.1}
  #allocation0 [shape = 'u32[]', space=smem, size = 0x4, offset = 0x4, fixed_abs, tag = 'smem constant byte address 0x4 - core index']
  #allocation1 [shape = 'u32[144,128]{1,0:T(1,128)}', space=vmem, size = 0x12000, scoped, tag = 'internal scratch']
  #allocation2 [shape = 'f32[8,256]{1,0:T(8,128)}', space=vmem, size = 0x2000, scoped, tag = 'scratch operand']
  #allocation3 [shape = 'f32[8,256]{1,0:T(8,128)}', space=vmem, size = 0x2000, scoped, tag = 'scratch operand']
  %s0 = inlined_call_operand.hbm [shape: bf16[8,32], index: 0, kind: input, shape index: {}]
  %s1 = inlined_call_operand.hbm [shape: bf16[8,16], index: 1, kind: input, shape index: {}]
  %s2 = inlined_call_operand.hbm [shape: bf16[8,32], index: 2, kind: input, shape index: {}]
  %s3 = inlined_call_operand.hbm [shape: bf16[32,256], index: 3, kind: input, shape index: {}]
  %s4 = inlined_call_operand.vmem [shape: f32[1,256], index: 4, kind: input, shape index: {}]
  %s5 = inlined_call_operand.hbm [shape: bf16[16,256], index: 5, kind: input, shape index: {}]
  %s6 = inlined_call_operand.vmem [shape: f32[1,256], index: 6, kind: input, shape index: {}]
  %s7 = inlined_call_operand.vmem [shape: f32[8,1], index: 7, kind: output, shape index: {}]
  %s8 = sld [smem:[#allocation0]]
  $region66: #{tpu_custom_call.1} parent=0
    _
  %s10 = ssub.s32 1, %s8
  %s11 = scalar_select 0, %s10, %s8
  $region1: #{tpu_custom_call.1} parent=0
    #allocation4 [shape = 'u8[2048]{0}', space=vmem, size = 0x800, scoped, tag = 'input window, operand 0, single buffered']
    #allocation5 [shape = 's32[1]{0}', space=sflag, size = 0x4, scoped, tag = 'scoped memory for tpu_custom_call.1']
    #allocation6 [shape = 'u8[2048]{0}', space=vmem, size = 0x800, scoped, tag = 'input window, operand 1, single buffered']
    #allocation7 [shape = 's32[1]{0}', space=sflag, size = 0x4, scoped, tag = 'scoped memory for tpu_custom_call.1']
    #allocation8 [shape = 'u8[2048]{0}', space=vmem, size = 0x800, scoped, tag = 'input window, operand 2, single buffered']
    #allocation9 [shape = 'u8[16384]{0}', space=vmem, size = 0x4000, scoped, tag = 'input window, operand 3, single buffered']
    #allocation10 [shape = 's32[1]{0}', space=sflag, size = 0x4, scoped, tag = 'scoped memory for tpu_custom_call.1']
    #allocation11 [shape = 'u8[8192]{0}', space=vmem, size = 0x2000, scoped, tag = 'input window, operand 5, single buffered']
    %12 = vsyncpa [#allocation5], 0
    %13 = vsyncpa [#allocation7], 0
    %14 = vsyncpa [#allocation10], 0
    // Predicated region
    $region2: #{tpu_custom_call.1} parent=1 // pred_check
      _
    $region3: #{tpu_custom_call.1} parent=1 // pred_check_branch
      %16 = sbr.rel (0) target = $region5
    $region4: #{tpu_custom_call.1} parent=1 // pred_region
      %s18 = ssub.s32 64, 64
      %19 = vsyncadd [#allocation5], %s18
      %s21 = sshll.u32 [#allocation4], 4
      %s22 = int_to_ptr.vmem [resolvable:$true] %s21
      %24 = dma.hbm_to_vmem [thread:$0]  %s0, 64, %s22, [#allocation5]
    $region5: #{tpu_custom_call.1} parent=1 // pred_fallthru
      _
    // Predicated region
    $region6: #{tpu_custom_call.1} parent=1 // pred_check
      _
    $region7: #{tpu_custom_call.1} parent=1 // pred_check_branch
      %26 = sbr.rel (0) target = $region9
    $region8: #{tpu_custom_call.1} parent=1 // pred_region
      %s28 = ssub.s32 64, 64
      %29 = vsyncadd [#allocation7], %s28
      %s31 = sshll.u32 [#allocation6], 4
      %s32 = int_to_ptr.vmem [resolvable:$true] %s31
      %34 = dma.hbm_to_vmem [thread:$0]  %s1, 64, %s32, [#allocation7]
    $region9: #{tpu_custom_call.1} parent=1 // pred_fallthru
      _
    // Predicated region
    $region10: #{tpu_custom_call.1} parent=1 // pred_check
      _
    $region11: #{tpu_custom_call.1} parent=1 // pred_check_branch
      %36 = sbr.rel (0) target = $region13
    $region12: #{tpu_custom_call.1} parent=1 // pred_region
      %s38 = ssub.s32 64, 64
      %39 = vsyncadd [#allocation7], %s38
      %s41 = sshll.u32 [#allocation8], 4
      %s42 = int_to_ptr.vmem [resolvable:$true] %s41
      %44 = dma.hbm_to_vmem [thread:$0]  %s2, 64, %s42, [#allocation7]
    $region13: #{tpu_custom_call.1} parent=1 // pred_fallthru
      _
    // Predicated region
    $region14: #{tpu_custom_call.1} parent=1 // pred_check
      _
    $region15: #{tpu_custom_call.1} parent=1 // pred_check_branch
      %46 = sbr.rel (0) target = $region17
    $region16: #{tpu_custom_call.1} parent=1 // pred_region
      %s48 = ssub.s32 512, 512
      %49 = vsyncadd [#allocation10], %s48
      %s50 = sshll.u32 [#allocation9], 4
      %s51 = int_to_ptr.vmem [resolvable:$true] %s50
      %56 = dma.hbm_to_vmem [thread:$0]  %s3, 512, %s51, [#allocation10], 128, 128, 8
    $region17: #{tpu_custom_call.1} parent=1 // pred_fallthru
      _
    // Predicated region
    $region18: #{tpu_custom_call.1} parent=1 // pred_check
      _
    $region19: #{tpu_custom_call.1} parent=1 // pred_check_branch
      %58 = sbr.rel (0) target = $region21
    $region20: #{tpu_custom_call.1} parent=1 // pred_region
      _
    $region21: #{tpu_custom_call.1} parent=1 // pred_fallthru
      _
    // Predicated region
    $region22: #{tpu_custom_call.1} parent=1 // pred_check
      _
    $region23: #{tpu_custom_call.1} parent=1 // pred_check_branch
      %60 = sbr.rel (0) target = $region25
    $region24: #{tpu_custom_call.1} parent=1 // pred_region
      %s62 = ssub.s32 256, 256
      %63 = vsyncadd [#allocation10], %s62
      %s64 = sshll.u32 [#allocation11], 4
      %s65 = int_to_ptr.vmem [resolvable:$true] %s64
      %70 = dma.hbm_to_vmem [thread:$0]  %s5, 256, %s65, [#allocation10], 128, 128, 8
    $region25: #{tpu_custom_call.1} parent=1 // pred_fallthru
      _
    // Predicated region
    $region26: #{tpu_custom_call.1} parent=1 // pred_check
      _
    $region27: #{tpu_custom_call.1} parent=1 // pred_check_branch
      %72 = sbr.rel (0) target = $region29
    $region28: #{tpu_custom_call.1} parent=1 // pred_region
      _
    $region29: #{tpu_custom_call.1} parent=1 // pred_fallthru
      _
    // Predicated region
    $region30: #{tpu_custom_call.1} parent=1 // pred_check
      _
    $region31: #{tpu_custom_call.1} parent=1 // pred_check_branch
      %74 = sbr.rel (0) target = $region33
    $region32: #{tpu_custom_call.1} parent=1 // pred_region
      %75 = dma.done [#allocation5], 64
    $region33: #{tpu_custom_call.1} parent=1 // pred_fallthru
      _
    // Predicated region
    $region34: #{tpu_custom_call.1} parent=1 // pred_check
      _
    $region35: #{tpu_custom_call.1} parent=1 // pred_check_branch
      %77 = sbr.rel (0) target = $region37
    $region36: #{tpu_custom_call.1} parent=1 // pred_region
      %78 = dma.done [#allocation7], 64
    $region37: #{tpu_custom_call.1} parent=1 // pred_fallthru
      _
    // Predicated region
    $region38: #{tpu_custom_call.1} parent=1 // pred_check
      _
    $region39: #{tpu_custom_call.1} parent=1 // pred_check_branch
      %80 = sbr.rel (0) target = $region41
    $region40: #{tpu_custom_call.1} parent=1 // pred_region
      %81 = dma.done [#allocation7], 64
    $region41: #{tpu_custom_call.1} parent=1 // pred_fallthru
      _
    // Predicated region
    $region42: #{tpu_custom_call.1} parent=1 // pred_check
      _
    $region43: #{tpu_custom_call.1} parent=1 // pred_check_branch
      %83 = sbr.rel (0) target = $region45
    $region44: #{tpu_custom_call.1} parent=1 // pred_region
      %84 = dma.done [#allocation10], 512
    $region45: #{tpu_custom_call.1} parent=1 // pred_fallthru
      _
    // Predicated region
    $region46: #{tpu_custom_call.1} parent=1 // pred_check
      _
    $region47: #{tpu_custom_call.1} parent=1 // pred_check_branch
      %86 = sbr.rel (0) target = $region49
    $region48: #{tpu_custom_call.1} parent=1 // pred_region
      %87 = dma.done [#allocation10], 256
    $region49: #{tpu_custom_call.1} parent=1 // pred_fallthru
      _
    %p89 = scmp.eq.s32.totalorder 0, 0
    // Predicated region
    $region50: #{tpu_custom_call.1} parent=1 // pred_check
      %p90 = pneg %p89
    $region51: #{tpu_custom_call.1} parent=1 // pred_check_branch
      %92 = sbr.rel (%p90) target = $region53
    $region52: #{tpu_custom_call.1} parent=1 // pred_region
      %93 = vst [vmem:[#allocation2] sm:$0xff] 0.0
      %94 = vst [vmem:[#allocation2 + $0x8] sm:$0xff] 0.0
      %95 = vst [vmem:[#allocation3] sm:$0xff] 0.0
      %96 = vst [vmem:[#allocation3 + $0x8] sm:$0xff] 0.0
    $region53: #{tpu_custom_call.1} parent=1 // pred_fallthru
      _
    %v97 = vld [vmem:[#allocation9] sm:$0xff]
    %v98 = vld [vmem:[#allocation9 + $0x8] sm:$0xff]
    %v99 = vld [vmem:[#allocation9 + $0x10] sm:$0xff]
    %v100 = vld [vmem:[#allocation9 + $0x18] sm:$0xff]
    %v101 = vld [vmem:[#allocation2] sm:$0xff]
    %v102 = vld [vmem:[#allocation2 + $0x8] sm:$0xff]
    %v103 = vld [vmem:[#allocation4] sm:$0xf]
    %v108 = vunpack.c.l.b16 %v97
    %v109 = vunpack.c.h.b16 %v97
    %v110 = vunpack.c.l.b16 %v98
    %v111 = vunpack.c.h.b16 %v98
    %v112 = vunpack.c.l.b16 %v99
    %v113 = vunpack.c.h.b16 %v99
    %v114 = vunpack.c.l.b16 %v100
    %v115 = vunpack.c.h.b16 %v100
    %v116 = vpack.c.b16 %v110, %v108
    %v117 = vpack.c.b16 %v111, %v109
    %v118 = vpack.c.b16 %v114, %v112
    %v119 = vpack.c.b16 %v115, %v113
    %vm124 = vcmask 261120
    %v126 = vsel %vm124, %v103, 0
    %128 = vmatprep.subr.bf16.mxu0 0
    %129 = vmatpush1.bf16.msra.mxu0 0
    %130 = vmatprep.subr.bf16.mxu0 0
    %131 = vmatpush1.bf16.msra.mxu0 0
    %132 = vmatprep.subr.bf16.mxu0 0
    %133 = vmatpush1.bf16.msra.mxu0 0
    %134 = vmatprep.subr.bf16.mxu0 0
    %135 = vmatpush1.bf16.msra.mxu0 0
    %136 = vmatprep.subr.bf16.mxu0 0
    %137 = vmatpush1.bf16.msra.mxu0 0
    %138 = vmatprep.subr.bf16.mxu0 0
    %139 = vmatpush1.bf16.msra.mxu0 0
    %140 = vmatprep.subr.bf16.mxu0 %v119
    %141 = vmatpush1.bf16.msra.mxu0 %v118
    %142 = vmatprep.subr.bf16.mxu0 %v117
    %143 = vmatpush1.bf16.msra.mxu0 %v116
    %144 = vmatprep.subr.bf16.mxu0 0
    %145 = vmatpush2.bf16.msra.mxu0 0
    %146 = vmatprep.subr.bf16.mxu0 0
    %147 = vmatpush2.bf16.msra.mxu0 0
    %148 = vmatprep.subr.bf16.mxu0 0
    %149 = vmatpush2.bf16.msra.mxu0 0
    %150 = vmatprep.subr.bf16.mxu0 0
    %151 = vmatpush2.bf16.msra.mxu0 0
    %152 = vmatprep.subr.bf16.mxu0 0
    %153 = vmatpush2.bf16.msra.mxu0 0
    %154 = vmatprep.subr.bf16.mxu0 0
    %155 = vmatpush2.bf16.msra.mxu0 0
    %156 = vmatprep.subr.bf16.mxu0 0
    %157 = vmatpush2.bf16.msra.mxu0 0
    %158 = vmatprep.subr.bf16.mxu0 0
    %159 = vmatpush2.bf16.msra.mxu0 0
    %160 = vmatprep.mubr.bf16.mxu0 0
    %161 = vmatmul.mubr.bf16.gmra.mxu0 %v126
    %v162 = vpop.f32.mrf.mxu0
    %v163 = vadd.f32 0.0, %v162
    %v164 = vpop.f32.mrf.mxu0
    %v165 = vadd.f32 0.0, %v164
    %v166 = vpop.f32.mrf.mxu0
    %v167 = vpop.f32.mrf.mxu0
    %168 = vdwg.mxu0
    %v169 = vadd.f32 %v101, %v163
    %v170 = vadd.f32 %v102, %v165
    %171 = vst [vmem:[#allocation2] sm:$0xff] %v169
    %172 = vst [vmem:[#allocation2 + $0x8] sm:$0xff] %v170
    %v173 = vld [vmem:[#allocation3] sm:$0xff]
    %v174 = vld [vmem:[#allocation3 + $0x8] sm:$0xff]
    %v175 = vld [vmem:[#allocation8] sm:$0xf]
    %v177 = vsel %vm124, %v175, 0
    %179 = vmatprep.subr.bf16.mxu0 0
    %180 = vmatpush1.bf16.msra.mxu0 0
    %181 = vmatprep.subr.bf16.mxu0 0
    %182 = vmatpush1.bf16.msra.mxu0 0
    %183 = vmatprep.subr.bf16.mxu0 0
    %184 = vmatpush1.bf16.msra.mxu0 0
    %185 = vmatprep.subr.bf16.mxu0 0
    %186 = vmatpush1.bf16.msra.mxu0 0
    %187 = vmatprep.subr.bf16.mxu0 0
    %188 = vmatpush1.bf16.msra.mxu0 0
    %189 = vmatprep.subr.bf16.mxu0 0
    %190 = vmatpush1.bf16.msra.mxu0 0
    %191 = vmatprep.subr.bf16.mxu0 %v119
    %192 = vmatpush1.bf16.msra.mxu0 %v118
    %193 = vmatprep.subr.bf16.mxu0 %v117
    %194 = vmatpush1.bf16.msra.mxu0 %v116
    %195 = vmatprep.subr.bf16.mxu0 0
    %196 = vmatpush2.bf16.msra.mxu0 0
    %197 = vmatprep.subr.bf16.mxu0 0
    %198 = vmatpush2.bf16.msra.mxu0 0
    %199 = vmatprep.subr.bf16.mxu0 0
    %200 = vmatpush2.bf16.msra.mxu0 0
    %201 = vmatprep.subr.bf16.mxu0 0
    %202 = vmatpush2.bf16.msra.mxu0 0
    %203 = vmatprep.subr.bf16.mxu0 0
    %204 = vmatpush2.bf16.msra.mxu0 0
    %205 = vmatprep.subr.bf16.mxu0 0
    %206 = vmatpush2.bf16.msra.mxu0 0
    %207 = vmatprep.subr.bf16.mxu0 0
    %208 = vmatpush2.bf16.msra.mxu0 0
    %209 = vmatprep.subr.bf16.mxu0 0
    %210 = vmatpush2.bf16.msra.mxu0 0
    %211 = vmatprep.mubr.bf16.mxu0 0
    %212 = vmatmul.mubr.bf16.gmra.mxu0 %v177
    %v213 = vpop.f32.mrf.mxu0
    %v214 = vadd.f32 0.0, %v213
    %v215 = vpop.f32.mrf.mxu0
    %v216 = vadd.f32 0.0, %v215
    %v217 = vpop.f32.mrf.mxu0
    %v218 = vpop.f32.mrf.mxu0
    %219 = vdwg.mxu0
    %v220 = vadd.f32 %v173, %v214
    %v221 = vadd.f32 %v174, %v216
    %222 = vst [vmem:[#allocation3] sm:$0xff] %v220
    %223 = vst [vmem:[#allocation3 + $0x8] sm:$0xff] %v221
    // Predicated region
    $region54: #{tpu_custom_call.1} parent=1 // pred_check
      %p224 = pneg %p89
    $region55: #{tpu_custom_call.1} parent=1 // pred_check_branch
      %226 = sbr.rel (%p224) target = $region57
    $region56: #{tpu_custom_call.1} parent=1 // pred_region
      %v227 = vld [vmem:[%s4] sm:$0x3]
      %v228 = vld [vmem:[#allocation2] sm:$0xff]
      %v229 = vld [vmem:[#allocation2 + $0x8] sm:$0xff]
      %v231 = vlaneseq
      %v232 = vshrl.u32 %v231, 7
      %v233 = vsub.s32 0, %v232
      %v234 = vrot.slane %v227, %v233
      %v235 = vlaneseq
      %v236 = vshrl.u32 %v235, 7
      %v237 = vsub.s32 1, %v236
      %v238 = vrot.slane %v227, %v237
      %v241 = vadd.f32 %v228, %v234
      %v242 = vadd.f32 %v229, %v238
      %v243 = vld [vmem:[#allocation3] sm:$0xff]
      %v244 = vld [vmem:[#allocation3 + $0x8] sm:$0xff]
      %v245 = vadd.f32 %v243, %v234
      %v246 = vadd.f32 %v244, %v238
      %v247 = vld [vmem:[#allocation6] sm:$0xf]
      %v248 = vld [vmem:[#allocation11] sm:$0xff]
      %v249 = vld [vmem:[#allocation11 + $0x8] sm:$0xff]
      %v250 = vld [vmem:[%s6] sm:$0x3]
      %v252 = vlaneseq
      %v253 = vshrl.u32 %v252, 7
      %v254 = vsub.s32 0, %v253
      %v255 = vrot.slane %v250, %v254
      %v256 = vlaneseq
      %v257 = vshrl.u32 %v256, 7
      %v258 = vsub.s32 1, %v257
      %v259 = vrot.slane %v250, %v258
      %v264 = vunpack.c.l.b16 %v248
      %v265 = vunpack.c.h.b16 %v248
      %v266 = vunpack.c.l.b16 %v249
      %v267 = vunpack.c.h.b16 %v249
      %v268 = vpack.c.b16 %v266, %v264
      %v269 = vpack.c.b16 %v267, %v265
      %vm272 = vcmask 130048
      %v274 = vsel %vm272, %v247, 0
      %276 = vmatprep.subr.bf16.mxu0 0
      %277 = vmatpush1.bf16.msra.mxu0 0
      %278 = vmatprep.subr.bf16.mxu0 0
      %279 = vmatpush1.bf16.msra.mxu0 0
      %280 = vmatprep.subr.bf16.mxu0 0
      %281 = vmatpush1.bf16.msra.mxu0 0
      %282 = vmatprep.subr.bf16.mxu0 0
      %283 = vmatpush1.bf16.msra.mxu0 0
      %284 = vmatprep.subr.bf16.mxu0 0
      %285 = vmatpush1.bf16.msra.mxu0 0
      %286 = vmatprep.subr.bf16.mxu0 0
      %287 = vmatpush1.bf16.msra.mxu0 0
      %288 = vmatprep.subr.bf16.mxu0 0
      %289 = vmatpush1.bf16.msra.mxu0 0
      %290 = vmatprep.subr.bf16.mxu0 %v269
      %291 = vmatpush1.bf16.msra.mxu0 %v268
      %292 = vmatprep.subr.bf16.mxu0 0
      %293 = vmatpush2.bf16.msra.mxu0 0
      %294 = vmatprep.subr.bf16.mxu0 0
      %295 = vmatpush2.bf16.msra.mxu0 0
      %296 = vmatprep.subr.bf16.mxu0 0
      %297 = vmatpush2.bf16.msra.mxu0 0
      %298 = vmatprep.subr.bf16.mxu0 0
      %299 = vmatpush2.bf16.msra.mxu0 0
      %300 = vmatprep.subr.bf16.mxu0 0
      %301 = vmatpush2.bf16.msra.mxu0 0
      %302 = vmatprep.subr.bf16.mxu0 0
      %303 = vmatpush2.bf16.msra.mxu0 0
      %304 = vmatprep.subr.bf16.mxu0 0
      %305 = vmatpush2.bf16.msra.mxu0 0
      %306 = vmatprep.subr.bf16.mxu0 0
      %307 = vmatpush2.bf16.msra.mxu0 0
      %308 = vmatprep.mubr.bf16.mxu0 0
      %309 = vmatmul.mubr.bf16.gmra.mxu0 %v274
      %v310 = vpop.f32.mrf.mxu0
      %v311 = vadd.f32 %v255, %v310
      %v312 = vpop.f32.mrf.mxu0
      %v313 = vadd.f32 %v259, %v312
      %v314 = vpop.f32.mrf.mxu0
      %v315 = vpop.f32.mrf.mxu0
      %316 = vdwg.mxu0
      %v317 = vmul.f32 %v241, %v311
      %v318 = vmul.f32 %v317, %v246
      %v319 = vmul.f32 %v245, %v313
      %v320 = vmul.f32 %v319, %v242
      %v321 = vadd.f32 %v318, %v320
      %322 = vadd.xlane.f32.xlu0 %v321
      %v323 = vpop.xlane.xlu0 %322
      %v324 = vmul.f32 %v323, 0.5
      %v325 = vmax.f32 %v324, -20.0
      %v326 = vmin.f32 %v325, 20.0
      %vm327 = vcmask 7168
      %328 = vst.msk [vmem:[%s7] sm:$0xff] %vm327, %v326
    $region57: #{tpu_custom_call.1} parent=1 // pred_fallthru
      _
    // Predicated region
    $region58: #{tpu_custom_call.1} parent=1 // pred_check
      _
    $region59: #{tpu_custom_call.1} parent=1 // pred_check_branch
      %330 = sbr.rel (0) target = $region61
    $region60: #{tpu_custom_call.1} parent=1 // pred_region
      _
    $region61: #{tpu_custom_call.1} parent=1 // pred_fallthru
      _
    // Predicated region
    $region62: #{tpu_custom_call.1} parent=1 // pred_check
      _
    $region63: #{tpu_custom_call.1} parent=1 // pred_check_branch
      %332 = sbr.rel (0) target = $region65
    $region64: #{tpu_custom_call.1} parent=1 // pred_region
      _
    $region65: #{tpu_custom_call.1} parent=1 // pred_fallthru
      _
    %333 = vsyncpa [#allocation5], 1
    %334 = vsyncpa [#allocation7], 1
    %335 = vsyncpa [#allocation10], 1

</llo_original>
